<compile_context>
chip_gen: v7x
topology: tpu7x:2x2x1
jax: 0.10.0
libtpu: 0.0.40
codegen_flags: <defaults>
</compile_context>

<pallas_src>
import jax
import jax.numpy as jnp
from jax.experimental import pallas as pl
from jax.experimental.pallas import tpu as pltpu

_LANE = 128  # TPU lane width


def _round_up(n, m):
    return ((n + m - 1) // m) * m


def _cdiv(a, b):
    return -(-a // b)


def _mlp_kernel(x_ref, w1_ref, b1_ref, w2_ref, b2_ref, o_ref):
    # (tile, F) @ (F, Hp) -> f32 on the MXU; bias + ReLU in f32 on the VPU.
    h = jnp.dot(x_ref[...], w1_ref[...], preferred_element_type=jnp.float32)
    h = jnp.maximum(h + b1_ref[...], 0.0)
    # Second matmul at the real output width T (MXU pads lanes internally);
    # the store is narrow but tiny -> minimal HBM writeback.
    y = jnp.dot(h.astype(w2_ref.dtype), w2_ref[...],
                preferred_element_type=jnp.float32)
    o_ref[...] = (y + b2_ref[...]).astype(o_ref.dtype)


def _choose_batch_tile(B):
    b8 = _round_up(max(B, 1), 8)
    if b8 <= 1024:
        return b8                       # single step; overhead negligible
    n_steps = max(2, _cdiv(b8, 2048))   # >= 2 steps so v7x megacore can split
    return _round_up(_cdiv(b8, n_steps), 8)


def mymodel_forward(x, w1, b1, w2, b2, *, batch_tile=None,
                    compute_dtype=jnp.bfloat16):
    """x: (B, F) float32; returns (B, T) float32.

    Inputs/weights are cast to `compute_dtype` (default bf16) for the MXU;
    accumulation stays f32, biases stay f32.
    """
    B, F = x.shape
    H = w1.shape[1]
    T = w2.shape[1]
    assert w1.shape == (F, H)
    assert w2.shape == (H, T)
    b1 = jnp.asarray(b1).reshape(1, H)
    b2 = jnp.asarray(b2).reshape(1, T)

    Hp = _round_up(H, _LANE)

    # Zero-pad only the hidden dim (exact: padded hidden units contribute 0).
    w1p = jnp.zeros((F, Hp), compute_dtype).at[:, :H].set(w1.astype(compute_dtype))
    b1p = jnp.zeros((1, Hp), jnp.float32).at[:, :H].set(b1.astype(jnp.float32))
    w2p = jnp.zeros((Hp, T), compute_dtype).at[:H, :].set(w2.astype(compute_dtype))
    b2f = b2.astype(jnp.float32)
    xc = x.astype(compute_dtype)

    # Tile selection: large tiles, but keep >= 2 steps for big batches.
    if batch_tile is None:
        batch_tile = _choose_batch_tile(B)
    batch_tile = max(8, _round_up(min(batch_tile, _round_up(B, 8)), 8))

    Bp = _round_up(B, batch_tile)
    if Bp != B:
        xc = jnp.pad(xc, ((0, Bp - B), (0, 0)))
    grid = Bp // batch_tile

    itemsize = jnp.dtype(compute_dtype).itemsize
    bytes_accessed = (Bp * F * itemsize            # x read
                      + F * Hp * itemsize          # w1
                      + Hp * 4 + T * 4             # biases (f32)
                      + Hp * T * itemsize          # w2
                      + Bp * T * 4)                # output write (f32)
    flops = 2 * Bp * (F * Hp + Hp * T)

    out = pl.pallas_call(
        _mlp_kernel,
        out_shape=jax.ShapeDtypeStruct((Bp, T), jnp.float32),
        grid=(grid,),
        in_specs=[
            pl.BlockSpec((batch_tile, F), lambda i: (i, 0)),
            pl.BlockSpec((F, Hp), lambda i: (0, 0)),   # VMEM-resident weights
            pl.BlockSpec((1, Hp), lambda i: (0, 0)),
            pl.BlockSpec((Hp, T), lambda i: (0, 0)),
            pl.BlockSpec((1, T), lambda i: (0, 0)),
        ],
        out_specs=pl.BlockSpec((batch_tile, T), lambda i: (i, 0)),
        compiler_params=pltpu.CompilerParams(
            dimension_semantics=("parallel",),
            vmem_limit_bytes=32 * 1024 * 1024),
        cost_estimate=pl.CostEstimate(
            flops=flops, transcendentals=0, bytes_accessed=bytes_accessed),
    )(xc, w1p, b1p, w2p, b2f)

    if Bp != B:
        out = out[:B]
    return out


if __name__ == "__main__":
    # Boston-housing-style shapes: 13 features, hidden=20 (fixed by module),
    # 1 regression target.
    features_num = 13
    hidden = 20
    target_num = 1
    batch = 8

    key = jax.random.PRNGKey(0)
    kx, kw1, kb1, kw2, kb2, kx2 = jax.random.split(key, 6)

    bound1 = 1.0 / jnp.sqrt(features_num)
    bound2 = 1.0 / jnp.sqrt(hidden)

    x = jax.random.normal(kx, (batch, features_num), dtype=jnp.float32)
    w1 = jax.random.uniform(kw1, (features_num, hidden), jnp.float32, -bound1, bound1)
    b1 = jax.random.uniform(kb1, (1, hidden), jnp.float32, -bound1, bound1)
    w2 = jax.random.uniform(kw2, (hidden, target_num), jnp.float32, -bound2, bound2)
    b2 = jax.random.uniform(kb2, (1, target_num), jnp.float32, -bound2, bound2)

    def ref_fn(xx):
        return jnp.maximum(xx @ w1 + b1, 0.0) @ w2 + b2

    # --- small-batch path (single grid step) -----------------------------
    out = mymodel_forward(x, w1, b1, w2, b2)
    jax.block_until_ready(out)
    assert out.shape == (batch, target_num)
    # bf16 inputs -> loose tolerance vs. the f32 reference.
    assert jnp.allclose(out, ref_fn(x), atol=2e-2, rtol=2e-2)

    # --- large-batch path (tiled, batch-parallel, 2 steps at B=2048) ------
    big_batch = 2048
    x_big = jax.random.normal(kx2, (big_batch, features_num), dtype=jnp.float32)
    out_big = mymodel_forward(x_big, w1, b1, w2, b2)
    jax.block_until_ready(out_big)
    assert out_big.shape == (big_batch, target_num)
    assert jnp.allclose(out_big, ref_fn(x_big), atol=2e-2, rtol=2e-2)

    # --- awkward batch (not a multiple of the tile) -----------------------
    x_odd = x_big[:1234]
    out_odd = mymodel_forward(x_odd, w1, b1, w2, b2)
    jax.block_until_ready(out_odd)
    assert out_odd.shape == (1234, target_num)
    assert jnp.allclose(out_odd, ref_fn(x_odd), atol=2e-2, rtol=2e-2)

    print("KERNEL_OK")
</pallas_src>

<mosaic_0001>
module attributes {stable_mosaic.version = 11 : i64} {
  func.func @_mlp_kernel(%arg0: i32, %arg1: memref<8x13xbf16, #tpu.memory_space<vmem>>, %arg2: memref<13x128xbf16, #tpu.memory_space<vmem>>, %arg3: memref<1x128xf32, #tpu.memory_space<vmem>>, %arg4: memref<128x1xbf16, #tpu.memory_space<vmem>>, %arg5: memref<1x1xf32, #tpu.memory_space<vmem>>, %arg6: memref<8x1xf32, #tpu.memory_space<vmem>>) attributes {dimension_semantics = [#tpu.dimension_semantics<parallel>], iteration_bounds = array<i64: 1>, scalar_prefetch = 0 : i64, scratch_operands = 0 : i64, tpu.core_type = #tpu.core_type<tc>, window_params = [{transform_indices = @transform_0, window_bounds = array<i64: 8, 13>}, {pipeline_mode = #tpu.pipeline_mode<synchronous>, transform_indices = @transform_1, window_bounds = array<i64: 13, 128>}, {pipeline_mode = #tpu.pipeline_mode<synchronous>, transform_indices = @transform_2, window_bounds = array<i64: 1, 128>}, {pipeline_mode = #tpu.pipeline_mode<synchronous>, transform_indices = @transform_3, window_bounds = array<i64: 128, 1>}, {pipeline_mode = #tpu.pipeline_mode<synchronous>, transform_indices = @transform_4, window_bounds = array<i64: 1, 1>}, {transform_indices = @transform_5, window_bounds = array<i64: 8, 1>}]} {
    %c0 = arith.constant 0 : index
    %c0_0 = arith.constant 0 : index
    %0 = vector.load %arg1[%c0, %c0_0] : memref<8x13xbf16, #tpu.memory_space<vmem>>, vector<8x13xbf16>
    %c0_1 = arith.constant 0 : index
    %c0_2 = arith.constant 0 : index
    %1 = vector.load %arg2[%c0_1, %c0_2] : memref<13x128xbf16, #tpu.memory_space<vmem>>, vector<13x128xbf16>
    %cst = arith.constant dense<0.000000e+00> : vector<8x128xf32>
    %2 = tpu.matmul %0, %1, %cst {dimension_numbers = #tpu.dot_dimension_numbers<[1], [0], [0], [1], [0, 0, 1, 1], [], []>} : vector<8x13xbf16>, vector<13x128xbf16>, vector<8x128xf32> -> vector<8x128xf32>
    %c0_3 = arith.constant 0 : index
    %c0_4 = arith.constant 0 : index
    %3 = vector.load %arg3[%c0_3, %c0_4] : memref<1x128xf32, #tpu.memory_space<vmem>>, vector<1x128xf32>
    %4 = vector.broadcast %3 : vector<1x128xf32> to vector<8x128xf32>
    %5 = arith.addf %2, %4 : vector<8x128xf32>
    %cst_5 = arith.constant 0.000000e+00 : f32
    %6 = vector.broadcast %cst_5 : f32 to vector<8x128xf32>
    %7 = arith.maximumf %5, %6 : vector<8x128xf32>
    %8 = arith.truncf %7 : vector<8x128xf32> to vector<8x128xbf16>
    %c0_6 = arith.constant 0 : index
    %c0_7 = arith.constant 0 : index
    %9 = vector.load %arg4[%c0_6, %c0_7] : memref<128x1xbf16, #tpu.memory_space<vmem>>, vector<128x1xbf16>
    %cst_8 = arith.constant dense<0.000000e+00> : vector<8x1xf32>
    %10 = tpu.matmul %8, %9, %cst_8 {dimension_numbers = #tpu.dot_dimension_numbers<[1], [0], [0], [1], [0, 0, 1, 1], [], []>} : vector<8x128xbf16>, vector<128x1xbf16>, vector<8x1xf32> -> vector<8x1xf32>
    %c0_9 = arith.constant 0 : index
    %c0_10 = arith.constant 0 : index
    %11 = vector.load %arg5[%c0_9, %c0_10] : memref<1x1xf32, #tpu.memory_space<vmem>>, vector<1x1xf32>
    %12 = vector.broadcast %11 : vector<1x1xf32> to vector<8x1xf32>
    %13 = arith.addf %10, %12 : vector<8x1xf32>
    %c0_11 = arith.constant 0 : index
    %c0_12 = arith.constant 0 : index
    %14 = vector.load %arg6[%c0_11, %c0_12] : memref<8x1xf32, #tpu.memory_space<vmem>>, vector<8x1xf32>
    tpu.vector_store %arg6[%c0_11, %c0_12], %13 {strides = array<i32>} : memref<8x1xf32, #tpu.memory_space<vmem>>, vector<8x1xf32>,
    return
  }
  func.func @transform_0(%arg0: i32) -> (i32, i32) {
    %c0_i32 = arith.constant 0 : i32
    %c0_i32_0 = arith.constant 0 : i32
    return %arg0, %c0_i32 : i32, i32
  }
  func.func @transform_1(%arg0: i32) -> (i32, i32) {
    %c0_i32 = arith.constant 0 : i32
    %c0_i32_0 = arith.constant 0 : i32
    %c0_i32_1 = arith.constant 0 : i32
    return %c0_i32, %c0_i32_0 : i32, i32
  }
  func.func @transform_2(%arg0: i32) -> (i32, i32) {
    %c0_i32 = arith.constant 0 : i32
    %c0_i32_0 = arith.constant 0 : i32
    %c0_i32_1 = arith.constant 0 : i32
    return %c0_i32, %c0_i32_0 : i32, i32
  }
  func.func @transform_3(%arg0: i32) -> (i32, i32) {
    %c0_i32 = arith.constant 0 : i32
    %c0_i32_0 = arith.constant 0 : i32
    %c0_i32_1 = arith.constant 0 : i32
    return %c0_i32, %c0_i32_0 : i32, i32
  }
  func.func @transform_4(%arg0: i32) -> (i32, i32) {
    %c0_i32 = arith.constant 0 : i32
    %c0_i32_0 = arith.constant 0 : i32
    %c0_i32_1 = arith.constant 0 : i32
    return %c0_i32, %c0_i32_0 : i32, i32
  }
  func.func @transform_5(%arg0: i32) -> (i32, i32) {
    %c0_i32 = arith.constant 0 : i32
    %c0_i32_0 = arith.constant 0 : i32
    return %arg0, %c0_i32 : i32, i32
  }
}

</mosaic_0001>

<llo_original>
// kernel: tpu_custom_call.1
$region0: #{tpu_custom_call.1}
  #allocation0 [shape = 'u32[]', space=smem, size = 0x4, offset = 0x4, fixed_abs, tag = 'smem constant byte address 0x4 - core index']
  #allocation1 [shape = 'u32[144,128]{1,0:T(1,128)}', space=vmem, size = 0x12000, scoped, tag = 'internal scratch']
  #allocation2 [shape = 'f32[1,1]{1,0:T(1,128)S(1)}', space=vmem, size = 0x200, scoped, tag = 'scoped memory for tpu_custom_call.1']
  %s0 = inlined_call_operand.vmem [shape: bf16[8,13], index: 0, kind: input, shape index: {}]
  %s1 = inlined_call_operand.vmem [shape: bf16[13,128], index: 1, kind: input, shape index: {}]
  %s2 = inlined_call_operand.vmem [shape: f32[1,128], index: 2, kind: input, shape index: {}]
  %s3 = inlined_call_operand.vmem [shape: bf16[128,1], index: 3, kind: input, shape index: {}]
  %s4 = inlined_call_operand.<no memory space> [shape: f32[1,1], index: 4, kind: input, shape index: {}]
  %s5 = inlined_call_operand.vmem [shape: f32[8,1], index: 5, kind: output, shape index: {}]
  %s6 = sld [smem:[#allocation0]]
  $region30: #{tpu_custom_call.1} parent=0
    _
  %s8 = ssub.s32 1, %s6
  %s9 = scalar_select 0, %s8, %s6
  %v10 = vstv %s4
  %11 = vst [vmem:[#allocation2] sm:$0x1] %v10
  // Predicated region
  $region2: #{tpu_custom_call.1} parent=0 // pred_check
    _
  $region3: #{tpu_custom_call.1} parent=0 // pred_check_branch
    %13 = sbr.rel (0) target = $region5
  $region4: #{tpu_custom_call.1} parent=0 // pred_region
    _
  $region5: #{tpu_custom_call.1} parent=0 // pred_fallthru
    _
  // Predicated region
  $region6: #{tpu_custom_call.1} parent=0 // pred_check
    _
  $region7: #{tpu_custom_call.1} parent=0 // pred_check_branch
    %15 = sbr.rel (0) target = $region9
  $region8: #{tpu_custom_call.1} parent=0 // pred_region
    _
  $region9: #{tpu_custom_call.1} parent=0 // pred_fallthru
    _
  // Predicated region
  $region10: #{tpu_custom_call.1} parent=0 // pred_check
    _
  $region11: #{tpu_custom_call.1} parent=0 // pred_check_branch
    %17 = sbr.rel (0) target = $region13
  $region12: #{tpu_custom_call.1} parent=0 // pred_region
    _
  $region13: #{tpu_custom_call.1} parent=0 // pred_fallthru
    _
  // Predicated region
  $region14: #{tpu_custom_call.1} parent=0 // pred_check
    _
  $region15: #{tpu_custom_call.1} parent=0 // pred_check_branch
    %19 = sbr.rel (0) target = $region17
  $region16: #{tpu_custom_call.1} parent=0 // pred_region
    _
  $region17: #{tpu_custom_call.1} parent=0 // pred_fallthru
    _
  // Predicated region
  $region18: #{tpu_custom_call.1} parent=0 // pred_check
    _
  $region19: #{tpu_custom_call.1} parent=0 // pred_check_branch
    %21 = sbr.rel (0) target = $region21
  $region20: #{tpu_custom_call.1} parent=0 // pred_region
    _
  $region21: #{tpu_custom_call.1} parent=0 // pred_fallthru
    _
  %v23 = vld [vmem:[%s0] sm:$0xf]
  %v24 = vld [vmem:[%s1] sm:$0xf]
  %v25 = vld [vmem:[%s1 + $0x4] sm:$0x7]
  %v26 = vld [vmem:[%s2] sm:$0x1]
  %v28 = vlaneseq
  %v29 = vshrl.u32 %v28, 7
  %v30 = vsub.s32 0, %v29
  %v31 = vrot.slane %v26, %v30
  %v35 = vunpack.c.l.b16 %v24
  %v36 = vunpack.c.l.b16 %v25
  %v37 = vpack.c.b16 %v36, %v35
  %vm38 = vcmask 105472
  %v40 = vsel %vm38, %v23, 0
  %vm42 = vcmask 1045504
  %vm43 = vcmask 1046528
  %v44 = vsel %vm42, 4294967295, 65535
  %v45 = vsel %vm43, %v44, 0
  %v47 = vand.u32 %v37, %v45
  %49 = vmatprep.subr.bf16.mxu0 0
  %50 = vmatpush1.bf16.msra.mxu0 %v47
  %51 = vmatprep.subr.bf16.mxu0 0
  %52 = vmatpush1.bf16.msra.mxu0 0
  %53 = vmatprep.subr.bf16.mxu0 0
  %54 = vmatpush1.bf16.msra.mxu0 0
  %55 = vmatprep.subr.bf16.mxu0 0
  %56 = vmatpush1.bf16.msra.mxu0 0
  %57 = vmatprep.subr.bf16.mxu0 0
  %58 = vmatpush1.bf16.msra.mxu0 0
  %59 = vmatprep.subr.bf16.mxu0 0
  %60 = vmatpush1.bf16.msra.mxu0 0
  %61 = vmatprep.subr.bf16.mxu0 0
  %62 = vmatpush1.bf16.msra.mxu0 0
  %63 = vmatprep.subr.bf16.mxu0 0
  %64 = vmatpush1.bf16.msra.mxu0 0
  %65 = vmatprep.subr.bf16.mxu0 0
  %66 = vmatpush1.bf16.msra.mxu0 0
  %67 = vmatprep.subr.bf16.mxu0 0
  %68 = vmatpush1.bf16.msra.mxu0 0
  %69 = vmatprep.subr.bf16.mxu0 0
  %70 = vmatpush1.bf16.msra.mxu0 0
  %71 = vmatprep.subr.bf16.mxu0 0
  %72 = vmatpush1.bf16.msra.mxu0 0
  %73 = vmatprep.subr.bf16.mxu0 0
  %74 = vmatpush1.bf16.msra.mxu0 0
  %75 = vmatprep.subr.bf16.mxu0 0
  %76 = vmatpush1.bf16.msra.mxu0 0
  %77 = vmatprep.subr.bf16.mxu0 0
  %78 = vmatpush1.bf16.msra.mxu0 0
  %79 = vmatprep.subr.bf16.mxu0 0
  %80 = vmatpush1.bf16.msra.mxu0 0
  %81 = vmatprep.mubr.bf16.mxu0 0
  %82 = vmatmul.mubr.bf16.gmra.mrb[0].mxu0 %v40
  %v83 = vpop.f32.mrb[0].mxu0
  %v84 = vadd.f32 %v31, %v83
  %v85 = vpop.f32.mrb[0].mxu0
  %v86 = vpop.f32.mrb[0].mxu0
  %v87 = vpop.f32.mrb[0].mxu0
  %88 = vdwg.mxu0
  %v89 = vmax.f32 %v84, 0.0
  %v90 = vpack.c.bf16 %v89, %v89
  %v91 = vld [vmem:[%s3] sm:$0xf]
  %v92 = vld [vmem:[%s3 + $0x4] sm:$0xf]
  %v93 = vld [vmem:[%s3 + $0x8] sm:$0xf]
  %v94 = vld [vmem:[%s3 + $0xc] sm:$0xf]
  %v95 = vld [vmem:[%s3 + $0x10] sm:$0xf]
  %v96 = vld [vmem:[%s3 + $0x14] sm:$0xf]
  %v97 = vld [vmem:[%s3 + $0x18] sm:$0xf]
  %v98 = vld [vmem:[%s3 + $0x1c] sm:$0xf]
  %v99 = vld [vmem:[%s3 + $0x20] sm:$0xf]
  %v100 = vld [vmem:[%s3 + $0x24] sm:$0xf]
  %v101 = vld [vmem:[%s3 + $0x28] sm:$0xf]
  %v102 = vld [vmem:[%s3 + $0x2c] sm:$0xf]
  %v103 = vld [vmem:[%s3 + $0x30] sm:$0xf]
  %v104 = vld [vmem:[%s3 + $0x34] sm:$0xf]
  %v105 = vld [vmem:[%s3 + $0x38] sm:$0xf]
  %v106 = vld [vmem:[%s3 + $0x3c] sm:$0xf]
  %v107 = vld [vmem:[#allocation2] sm:$0x1]
  %v109 = vlaneseq
  %v110 = vshrl.u32 %v109, 7
  %v111 = vsub.s32 0, %v110
  %v112 = vrot.slane %v107, %v111
  %v130 = vunpack.c.l.b16 %v91
  %v131 = vunpack.c.l.b16 %v92
  %v132 = vunpack.c.l.b16 %v93
  %v133 = vunpack.c.l.b16 %v94
  %v134 = vunpack.c.l.b16 %v95
  %v135 = vunpack.c.l.b16 %v96
  %v136 = vunpack.c.l.b16 %v97
  %v137 = vunpack.c.l.b16 %v98
  %v138 = vunpack.c.l.b16 %v99
  %v139 = vunpack.c.l.b16 %v100
  %v140 = vunpack.c.l.b16 %v101
  %v141 = vunpack.c.l.b16 %v102
  %v142 = vunpack.c.l.b16 %v103
  %v143 = vunpack.c.l.b16 %v104
  %v144 = vunpack.c.l.b16 %v105
  %v145 = vunpack.c.l.b16 %v106
  %v146 = vpack.c.b16 %v131, %v130
  %v147 = vpack.c.b16 %v133, %v132
  %v148 = vpack.c.b16 %v135, %v134
  %v149 = vpack.c.b16 %v137, %v136
  %v150 = vpack.c.b16 %v139, %v138
  %v151 = vpack.c.b16 %v141, %v140
  %v152 = vpack.c.b16 %v143, %v142
  %v153 = vpack.c.b16 %v145, %v144
  %162 = vmatprep.subr.bf16.mxu0 0
  %163 = vmatpush1.bf16.msra.mxu0 %v146
  %164 = vmatprep.subr.bf16.mxu0 0
  %165 = vmatpush1.bf16.msra.mxu0 %v147
  %166 = vmatprep.subr.bf16.mxu0 0
  %167 = vmatpush1.bf16.msra.mxu0 %v148
  %168 = vmatprep.subr.bf16.mxu0 0
  %169 = vmatpush1.bf16.msra.mxu0 %v149
  %170 = vmatprep.subr.bf16.mxu0 0
  %171 = vmatpush1.bf16.msra.mxu0 %v150
  %172 = vmatprep.subr.bf16.mxu0 0
  %173 = vmatpush1.bf16.msra.mxu0 %v151
  %174 = vmatprep.subr.bf16.mxu0 0
  %175 = vmatpush1.bf16.msra.mxu0 %v152
  %176 = vmatprep.subr.bf16.mxu0 0
  %177 = vmatpush1.bf16.msra.mxu0 %v153
  %178 = vmatprep.subr.bf16.mxu0 0
  %179 = vmatpush1.bf16.msra.mxu0 0
  %180 = vmatprep.subr.bf16.mxu0 0
  %181 = vmatpush1.bf16.msra.mxu0 0
  %182 = vmatprep.subr.bf16.mxu0 0
  %183 = vmatpush1.bf16.msra.mxu0 0
  %184 = vmatprep.subr.bf16.mxu0 0
  %185 = vmatpush1.bf16.msra.mxu0 0
  %186 = vmatprep.subr.bf16.mxu0 0
  %187 = vmatpush1.bf16.msra.mxu0 0
  %188 = vmatprep.subr.bf16.mxu0 0
  %189 = vmatpush1.bf16.msra.mxu0 0
  %190 = vmatprep.subr.bf16.mxu0 0
  %191 = vmatpush1.bf16.msra.mxu0 0
  %192 = vmatprep.subr.bf16.mxu0 0
  %193 = vmatpush1.bf16.msra.mxu0 0
  %194 = vmatprep.mubr.bf16.mxu0 0
  %195 = vmatmul.mubr.bf16.gmra.mrb[0].mxu0 %v90
  %v196 = vpop.f32.mrb[0].mxu0
  %v197 = vadd.f32 %v112, %v196
  %v198 = vpop.f32.mrb[0].mxu0
  %v199 = vpop.f32.mrb[0].mxu0
  %v200 = vpop.f32.mrb[0].mxu0
  %201 = vdwg.mxu0
  %vm202 = vcmask 7168
  %203 = vst.msk [vmem:[%s5] sm:$0xff] %vm202, %v197
  // Predicated region
  $region22: #{tpu_custom_call.1} parent=0 // pred_check
    _
  $region23: #{tpu_custom_call.1} parent=0 // pred_check_branch
    %205 = sbr.rel (0) target = $region25
  $region24: #{tpu_custom_call.1} parent=0 // pred_region
    _
  $region25: #{tpu_custom_call.1} parent=0 // pred_fallthru
    _
  // Predicated region
  $region26: #{tpu_custom_call.1} parent=0 // pred_check
    _
  $region27: #{tpu_custom_call.1} parent=0 // pred_check_branch
    %207 = sbr.rel (0) target = $region29
  $region28: #{tpu_custom_call.1} parent=0 // pred_region
    _
  $region29: #{tpu_custom_call.1} parent=0 // pred_fallthru
    _

</llo_original>
